<compile_context>
chip_gen: v5e
topology: v5e:2x2
jax: 0.10.0
libtpu: 0.0.40
codegen_flags: <defaults>
</compile_context>

<pallas_src>
import functools

import jax
import jax.numpy as jnp
from jax import lax
from jax.experimental import pallas as pl
from jax.experimental.pallas import tpu as pltpu


# ---------------------------------------------------------------------------
# Fused kernel: streaming spatial-sum reduction + MLP epilogue on last step.
# ---------------------------------------------------------------------------
def _adaptive_window_kernel(x_ref, w1_ref, b1_ref, w2_ref, b2_ref, o_ref,
                            acc_ref, *, s_total, tile_s, n_steps, needs_mask,
                            inv_s):
    """x_ref: (B, C, tile_s) native-dtype block of the flattened input.
    w1_ref: (C, 64), b1_ref: (1, 64), w2_ref: (1, 64), b2_ref: (1, 1) —
    resident (constant index_map) f32 weight blocks.
    o_ref: (1, 1) f32 complexity score, written only on the last step.
    acc_ref: (B, C) f32 VMEM scratch accumulator (persists across steps).
    """
    k = pl.program_id(0)
    last = n_steps - 1

    @pl.when(k == 0)
    def _():
        acc_ref[...] = jnp.zeros_like(acc_ref)

    x = x_ref[...].astype(jnp.float32)          # in-kernel cast, f32 accumulate

    if needs_mask:
        # Grid is exact (no phantom blocks); only the final boundary block is
        # ragged, so the iota+compare+select mask runs on that single step.
        @pl.when(k != last)
        def _():
            acc_ref[...] += jnp.sum(x, axis=-1)

        @pl.when(k == last)
        def _():
            valid = s_total - last * tile_s     # static Python int
            lane = lax.broadcasted_iota(jnp.int32, x.shape, 2)
            acc_ref[...] += jnp.sum(jnp.where(lane < valid, x, 0.0), axis=-1)
    else:
        acc_ref[...] += jnp.sum(x, axis=-1)

    @pl.when(k == last)
    def _():
        # Fused epilogue (runs once): mean -> Linear(dim,64) -> ReLU ->
        # Linear(64,1) -> sigmoid -> batch mean.  VPU-only; no MXU wake-up.
        pooled = acc_ref[...] * inv_s                                   # (B, C)
        h = jnp.sum(pooled[:, :, None] * w1_ref[...][None, :, :], axis=1)
        h = jnp.maximum(h + b1_ref[...], 0.0)                           # (B, 64)
        logit = jnp.sum(h * w2_ref[...], axis=-1, keepdims=True) + b2_ref[...]
        score = jax.nn.sigmoid(logit)                                   # (B, 1)
        o_ref[...] = jnp.mean(score).reshape(1, 1)


# ---------------------------------------------------------------------------
# Jitted device-side wrapper.
# ---------------------------------------------------------------------------
@functools.partial(jax.jit, static_argnames=("block_bytes_target",))
def complexity_score_pallas(x_ncdhw, w1_t, b1, w2, b2,
                            block_bytes_target=4 * 1024 * 1024):
    """Run the feature-analyzer forward in one Pallas call. Returns (1,1) f32."""
    B, C, D, H, W = x_ncdhw.shape
    S = D * H * W
    x = x_ncdhw.reshape(B, C, S)          # contiguous reshape, native dtype

    w1_t = w1_t.astype(jnp.float32)                 # (C, 64)
    b1 = b1.reshape(1, -1).astype(jnp.float32)      # (1, 64)
    w2 = w2.reshape(1, -1).astype(jnp.float32)      # (1, 64)
    b2 = b2.reshape(1, 1).astype(jnp.float32)       # (1, 1)
    hidden = w1_t.shape[1]

    # ---- byte-targeted, VMEM-safe tile size ---------------------------------
    itemsize = x.dtype.itemsize
    row_bytes = B * C * itemsize                    # bytes per S-lane of a block
    vmem_limit = 32 * 1024 * 1024                   # safe on v5e/v6e/v7x
    block_bytes = min(block_bytes_target, vmem_limit // 3)   # 2x input + slack
    tile_s = max((block_bytes // row_bytes) // 128 * 128, 128)
    if tile_s >= S:
        tile_s = S                                  # full axis -> always legal
    n_steps = (S + tile_s - 1) // tile_s            # exact grid, no phantoms
    needs_mask = (n_steps * tile_s) != S

    kernel = functools.partial(
        _adaptive_window_kernel, s_total=S, tile_s=tile_s, n_steps=n_steps,
        needs_mask=needs_mask, inv_s=1.0 / S)

    cost = pl.CostEstimate(
        flops=B * C * S + 2 * B * C * hidden,
        transcendentals=B,
        bytes_accessed=B * C * S * itemsize + (C + 3) * hidden * 4 + 8)

    score = pl.pallas_call(
        kernel,
        out_shape=jax.ShapeDtypeStruct((1, 1), jnp.float32),
        grid_spec=pltpu.PrefetchScalarGridSpec(
            num_scalar_prefetch=0,
            grid=(n_steps,),
            in_specs=[
                pl.BlockSpec((B, C, tile_s), lambda k: (0, 0, k)),
                pl.BlockSpec((C, hidden), lambda k: (0, 0)),   # resident weights
                pl.BlockSpec((1, hidden), lambda k: (0, 0)),
                pl.BlockSpec((1, hidden), lambda k: (0, 0)),
                pl.BlockSpec((1, 1), lambda k: (0, 0)),
            ],
            out_specs=pl.BlockSpec((1, 1), lambda k: (0, 0)),
            scratch_shapes=[pltpu.VMEM((B, C), jnp.float32)]),
        compiler_params=pltpu.CompilerParams(
            dimension_semantics=("arbitrary",),
            vmem_limit_bytes=vmem_limit),
        cost_estimate=cost,
    )(x, w1_t, b1, w2, b2)
    return score


class AdaptiveWindowSizeModuleJAX:
    """JAX/Pallas port of AdaptiveWindowSizeModule."""

    def __init__(self, dim, base_window_size=7, min_size=3, max_size=14, key=None):
        self.base_window_size = base_window_size
        self.min_size = min_size
        self.max_size = max_size
        if key is None:
            key = jax.random.PRNGKey(0)
        k1, k2, k3, k4 = jax.random.split(key, 4)
        # PyTorch Linear stores (out, in); keep that convention.
        bound1 = 1.0 / (dim ** 0.5)
        bound2 = 1.0 / (64.0 ** 0.5)
        self.w1 = jax.random.uniform(k1, (64, dim), jnp.float32, -bound1, bound1)
        self.b1 = jax.random.uniform(k2, (64,), jnp.float32, -bound1, bound1)
        self.w2 = jax.random.uniform(k3, (1, 64), jnp.float32, -bound2, bound2)
        self.b2 = jax.random.uniform(k4, (1,), jnp.float32, -bound2, bound2)

    def __call__(self, x_ncdhw):
        score_arr = complexity_score_pallas(
            x_ncdhw, self.w1.T, self.b1, self.w2, self.b2)
        # TODO(synk): the original forward does `.item()` + Python int math, so
        # this host round-trip is part of the spec and stays on the host.
        complexity_score = float(jax.device_get(score_arr)[0, 0])
        adaptive_size = int(self.base_window_size * (1.5 - complexity_score))
        adaptive_size = max(self.min_size, min(self.max_size, adaptive_size))
        if adaptive_size % 2 == 0:
            adaptive_size += 1
        return adaptive_size


def _reference_score(x, w1, b1, w2, b2):
    # Pure-JAX reference for the correctness check.
    B, C = x.shape[0], x.shape[1]
    pooled = jnp.mean(x.reshape(B, C, -1).astype(jnp.float32), axis=-1)
    h = jnp.maximum(pooled @ w1.T + b1, 0.0)
    score = jax.nn.sigmoid(h @ w2.T + b2)
    return jnp.mean(score)


if __name__ == "__main__":
    key = jax.random.PRNGKey(0)
    kx1, kx2, kx3, kp = jax.random.split(key, 4)

    dim = 32
    mod = AdaptiveWindowSizeModuleJAX(dim=dim, key=kp)

    # Case 1: S = 16^3 = 4096 -> single full-axis tile, unmasked fast path.
    x1 = jax.random.normal(kx1, (2, dim, 16, 16, 16), jnp.float32)
    # Case 2: S = 16*12*11 = 2112 with a small forced tile target (256 lanes)
    #         -> 9 grid steps with a ragged last tile (exercises the gated mask).
    x2 = jax.random.normal(kx2, (2, dim, 16, 12, 11), jnp.float32)
    # Case 3: bf16 input streamed in native dtype with f32 accumulation.
    x3 = jax.random.normal(kx3, (2, dim, 16, 16, 16),
                           jnp.float32).astype(jnp.bfloat16)

    cases = [(x1, 4 * 1024 * 1024), (x2, 64 * 1024), (x3, 4 * 1024 * 1024)]
    for x, tgt in cases:
        got = complexity_score_pallas(x, mod.w1.T, mod.b1, mod.w2, mod.b2,
                                      block_bytes_target=tgt)
        jax.block_until_ready(got)
        ref = _reference_score(x, mod.w1, mod.b1, mod.w2, mod.b2)
        assert abs(float(got[0, 0]) - float(ref)) < 1e-4, (
            f"mismatch: {float(got[0, 0])} vs {float(ref)} for shape {x.shape}")

    window_size = mod(x1)
    assert mod.min_size <= window_size <= mod.max_size + 1
    assert window_size % 2 == 1

    print("KERNEL_OK")
</pallas_src>

<mosaic_0001>
module attributes {stable_mosaic.version = 11 : i64} {
  func.func @_adaptive_window_kernel(%arg0: i32, %arg1: memref<2x32x4096xf32, #tpu.memory_space<vmem>>, %arg2: memref<32x64xf32, #tpu.memory_space<vmem>>, %arg3: memref<1x64xf32, #tpu.memory_space<vmem>>, %arg4: memref<1x64xf32, #tpu.memory_space<vmem>>, %arg5: memref<1x1xf32, #tpu.memory_space<vmem>>, %arg6: memref<1x1xf32, #tpu.memory_space<vmem>>, %arg7: memref<2x32xf32, #tpu.memory_space<vmem>>) attributes {dimension_semantics = [#tpu.dimension_semantics<arbitrary>], iteration_bounds = array<i64: 1>, scalar_prefetch = 0 : i64, scratch_operands = 1 : i64, tpu.core_type = #tpu.core_type<tc>, window_params = [{transform_indices = @transform_0, window_bounds = array<i64: 2, 32, 4096>}, {pipeline_mode = #tpu.pipeline_mode<synchronous>, transform_indices = @transform_1, window_bounds = array<i64: 32, 64>}, {pipeline_mode = #tpu.pipeline_mode<synchronous>, transform_indices = @transform_2, window_bounds = array<i64: 1, 64>}, {pipeline_mode = #tpu.pipeline_mode<synchronous>, transform_indices = @transform_3, window_bounds = array<i64: 1, 64>}, {pipeline_mode = #tpu.pipeline_mode<synchronous>, transform_indices = @transform_4, window_bounds = array<i64: 1, 1>}, {pipeline_mode = #tpu.pipeline_mode<synchronous>, transform_indices = @transform_5, window_bounds = array<i64: 1, 1>}]} {
    %c0_i32 = arith.constant 0 : i32
    %0 = arith.cmpi eq, %arg0, %c0_i32 : i32
    %1 = arith.extui %0 : i1 to i32
    %c0_i32_0 = arith.constant 0 : i32
    %2 = arith.cmpi ne, %1, %c0_i32_0 : i32
    scf.if %2 {
      %cst_9 = arith.constant 0.000000e+00 : f32
      %11 = vector.broadcast %cst_9 : f32 to vector<2x32xf32>
      %c0_10 = arith.constant 0 : index
      %c0_11 = arith.constant 0 : index
      %12 = vector.load %arg7[%c0_10, %c0_11] : memref<2x32xf32, #tpu.memory_space<vmem>>, vector<2x32xf32>
      tpu.vector_store %arg7[%c0_10, %c0_11], %11 {strides = array<i32>} : memref<2x32xf32, #tpu.memory_space<vmem>>, vector<2x32xf32>,
    } else {
    }
    %c0 = arith.constant 0 : index
    %c0_1 = arith.constant 0 : index
    %c0_2 = arith.constant 0 : index
    %3 = vector.load %arg1[%c0, %c0_1, %c0_2] : memref<2x32x4096xf32, #tpu.memory_space<vmem>>, vector<2x32x4096xf32>
    %c0_3 = arith.constant 0 : index
    %c0_4 = arith.constant 0 : index
    %4 = vector.load %arg7[%c0_3, %c0_4] : memref<2x32xf32, #tpu.memory_space<vmem>>, vector<2x32xf32>
    %cst = arith.constant dense<0.000000e+00> : vector<2x32xf32>
    %5 = vector.multi_reduction <add>, %3, %cst [2] : vector<2x32x4096xf32> to vector<2x32xf32>
    %6 = arith.addf %4, %5 : vector<2x32xf32>
    %c0_5 = arith.constant 0 : index
    %c0_6 = arith.constant 0 : index
    %7 = vector.load %arg7[%c0_5, %c0_6] : memref<2x32xf32, #tpu.memory_space<vmem>>, vector<2x32xf32>
    tpu.vector_store %arg7[%c0_5, %c0_6], %6 {strides = array<i32>} : memref<2x32xf32, #tpu.memory_space<vmem>>, vector<2x32xf32>,
    %c0_i32_7 = arith.constant 0 : i32
    %8 = arith.cmpi eq, %arg0, %c0_i32_7 : i32
    %9 = arith.extui %8 : i1 to i32
    %c0_i32_8 = arith.constant 0 : i32
    %10 = arith.cmpi ne, %9, %c0_i32_8 : i32
    scf.if %10 {
      %c0_9 = arith.constant 0 : index
      %c0_10 = arith.constant 0 : index
      %11 = vector.load %arg7[%c0_9, %c0_10] : memref<2x32xf32, #tpu.memory_space<vmem>>, vector<2x32xf32>
      %cst_11 = arith.constant 2.44140625E-4 : f32
      %12 = vector.broadcast %cst_11 : f32 to vector<2x32xf32>
      %13 = arith.mulf %11, %12 : vector<2x32xf32>
      %14 = vector.shape_cast %13 : vector<2x32xf32> to vector<2x32x1xf32>
      %c0_12 = arith.constant 0 : index
      %c0_13 = arith.constant 0 : index
      %15 = vector.load %arg2[%c0_12, %c0_13] : memref<32x64xf32, #tpu.memory_space<vmem>>, vector<32x64xf32>
      %16 = vector.shape_cast %15 : vector<32x64xf32> to vector<1x32x64xf32>
      %17 = vector.broadcast %14 : vector<2x32x1xf32> to vector<2x32x64xf32>
      %18 = vector.broadcast %16 : vector<1x32x64xf32> to vector<2x32x64xf32>
      %19 = arith.mulf %17, %18 : vector<2x32x64xf32>
      %cst_14 = arith.constant dense<0.000000e+00> : vector<2x64xf32>
      %20 = vector.multi_reduction <add>, %19, %cst_14 [1] : vector<2x32x64xf32> to vector<2x64xf32>
      %c0_15 = arith.constant 0 : index
      %c0_16 = arith.constant 0 : index
      %21 = vector.load %arg3[%c0_15, %c0_16] : memref<1x64xf32, #tpu.memory_space<vmem>>, vector<1x64xf32>
      %22 = vector.broadcast %21 : vector<1x64xf32> to vector<2x64xf32>
      %23 = arith.addf %20, %22 : vector<2x64xf32>
      %cst_17 = arith.constant 0.000000e+00 : f32
      %24 = vector.broadcast %cst_17 : f32 to vector<2x64xf32>
      %25 = arith.maximumf %23, %24 : vector<2x64xf32>
      %c0_18 = arith.constant 0 : index
      %c0_19 = arith.constant 0 : index
      %26 = vector.load %arg4[%c0_18, %c0_19] : memref<1x64xf32, #tpu.memory_space<vmem>>, vector<1x64xf32>
      %27 = vector.broadcast %26 : vector<1x64xf32> to vector<2x64xf32>
      %28 = arith.mulf %25, %27 : vector<2x64xf32>
      %cst_20 = arith.constant dense<0.000000e+00> : vector<2xf32>
      %29 = vector.multi_reduction <add>, %28, %cst_20 [1] : vector<2x64xf32> to vector<2xf32>
      %30 = vector.shape_cast %29 : vector<2xf32> to vector<2x1xf32>
      %c0_21 = arith.constant 0 : index
      %c0_22 = arith.constant 0 : index
      %31 = vector.load %arg5[%c0_21, %c0_22] : memref<1x1xf32, #tpu.memory_space<vmem>>, vector<1x1xf32>
      %32 = vector.broadcast %31 : vector<1x1xf32> to vector<2x1xf32>
      %33 = arith.addf %30, %32 : vector<2x1xf32>
      %34 = arith.negf %33 : vector<2x1xf32>
      %35 = math.exp %34 : vector<2x1xf32>
      %cst_23 = arith.constant 1.000000e+00 : f32
      %36 = vector.broadcast %cst_23 : f32 to vector<2x1xf32>
      %37 = arith.addf %36, %35 : vector<2x1xf32>
      %38 = arith.divf %36, %37 : vector<2x1xf32>
      %39 = vector.shape_cast %38 : vector<2x1xf32> to vector<1x2x1xf32>
      %cst_24 = arith.constant dense<0.000000e+00> : vector<1xf32>
      %40 = vector.multi_reduction <add>, %39, %cst_24 [1, 2] : vector<1x2x1xf32> to vector<1xf32>
      %41 = vector.shape_cast %40 : vector<1xf32> to vector<1x1x1xf32>
      %42 = vector.extract %41[0, 0, 0] : f32 from vector<1x1x1xf32>
      %cst_25 = arith.constant 2.000000e+00 : f32
      %43 = arith.divf %42, %cst_25 : f32
      %44 = vector.broadcast %43 : f32 to vector<1x1xf32>
      %c0_26 = arith.constant 0 : index
      %c0_27 = arith.constant 0 : index
      %45 = vector.load %arg6[%c0_26, %c0_27] : memref<1x1xf32, #tpu.memory_space<vmem>>, vector<1x1xf32>
      tpu.vector_store %arg6[%c0_26, %c0_27], %44 {strides = array<i32>} : memref<1x1xf32, #tpu.memory_space<vmem>>, vector<1x1xf32>,
    } else {
    }
    return
  }
  func.func @transform_0(%arg0: i32) -> (i32, i32, i32) {
    %c0_i32 = arith.constant 0 : i32
    %c0_i32_0 = arith.constant 0 : i32
    %c0_i32_1 = arith.constant 0 : i32
    return %c0_i32, %c0_i32_0, %arg0 : i32, i32, i32
  }
  func.func @transform_1(%arg0: i32) -> (i32, i32) {
    %c0_i32 = arith.constant 0 : i32
    %c0_i32_0 = arith.constant 0 : i32
    %c0_i32_1 = arith.constant 0 : i32
    return %c0_i32, %c0_i32_0 : i32, i32
  }
  func.func @transform_2(%arg0: i32) -> (i32, i32) {
    %c0_i32 = arith.constant 0 : i32
    %c0_i32_0 = arith.constant 0 : i32
    %c0_i32_1 = arith.constant 0 : i32
    return %c0_i32, %c0_i32_0 : i32, i32
  }
  func.func @transform_3(%arg0: i32) -> (i32, i32) {
    %c0_i32 = arith.constant 0 : i32
    %c0_i32_0 = arith.constant 0 : i32
    %c0_i32_1 = arith.constant 0 : i32
    return %c0_i32, %c0_i32_0 : i32, i32
  }
  func.func @transform_4(%arg0: i32) -> (i32, i32) {
    %c0_i32 = arith.constant 0 : i32
    %c0_i32_0 = arith.constant 0 : i32
    %c0_i32_1 = arith.constant 0 : i32
    return %c0_i32, %c0_i32_0 : i32, i32
  }
  func.func @transform_5(%arg0: i32) -> (i32, i32) {
    %c0_i32 = arith.constant 0 : i32
    %c0_i32_0 = arith.constant 0 : i32
    %c0_i32_1 = arith.constant 0 : i32
    return %c0_i32, %c0_i32_0 : i32, i32
  }
}

</mosaic_0001>

<llo_original>
// kernel: complexity_score_pallas.1
$region0: #{complexity_score_pallas.1}
  #allocation0 [shape = 'u32[]', space=smem, size = 0x4, offset = 0x4, fixed_abs, tag = 'smem constant byte address 0x4 - core index']
  #allocation1 [shape = 'u32[72,128]{1,0:T(1,128)}', space=vmem, size = 0x9000, scoped, tag = 'internal scratch']
  #allocation2 [shape = 'f32[2,32]{1,0:T(2,128)}', space=vmem, size = 0x400, scoped, tag = 'scratch operand']
  #allocation3 [shape = 'f32[1,1]{1,0:T(1,128)S(1)}', space=vmem, size = 0x200, scoped, tag = 'scoped memory for complexity_score_pallas.1']
  %s0 = inlined_call_operand.vmem [shape: f32[2,32,4096], index: 0, kind: input, shape index: {}]
  %s1 = inlined_call_operand.vmem [shape: f32[32,64], index: 1, kind: input, shape index: {}]
  %s2 = inlined_call_operand.vmem [shape: f32[1,64], index: 2, kind: input, shape index: {}]
  %s3 = inlined_call_operand.vmem [shape: f32[1,64], index: 3, kind: input, shape index: {}]
  %s4 = inlined_call_operand.<no memory space> [shape: f32[1,1], index: 4, kind: input, shape index: {}]
  %s5 = inlined_call_operand.hbm [shape: f32[1,1], index: 5, kind: output, shape index: {}]
  %s6 = sld [smem:[#allocation0]]
  $region38: #{complexity_score_pallas.1} parent=0
    _
  %s8 = ssub.s32 1, %s6
  %s9 = scalar_select 0, %s8, %s6
  %v10 = vstv %s4
  %11 = vst [vmem:[#allocation3] sm:$0x1] %v10
  $region1: #{complexity_score_pallas.1} parent=0
    #allocation4 [shape = 'u8[512]{0}', space=vmem, size = 0x400, scoped, tag = 'output window, operand 0, single buffered']
    #allocation5 [shape = 's32[1]{0}', space=sflag, size = 0x4, scoped, tag = 'scoped memory for complexity_score_pallas.1']
    %12 = vsyncpa [#allocation5], 0
    // Predicated region
    $region2: #{complexity_score_pallas.1} parent=1 // pred_check
      _
    $region3: #{complexity_score_pallas.1} parent=1 // pred_check_branch
      %14 = sbr.rel (0) target = $region5
    $region4: #{complexity_score_pallas.1} parent=1 // pred_region
      _
    $region5: #{complexity_score_pallas.1} parent=1 // pred_fallthru
      _
    // Predicated region
    $region6: #{complexity_score_pallas.1} parent=1 // pred_check
      _
    $region7: #{complexity_score_pallas.1} parent=1 // pred_check_branch
      %16 = sbr.rel (0) target = $region9
    $region8: #{complexity_score_pallas.1} parent=1 // pred_region
      _
    $region9: #{complexity_score_pallas.1} parent=1 // pred_fallthru
      _
    // Predicated region
    $region10: #{complexity_score_pallas.1} parent=1 // pred_check
      _
    $region11: #{complexity_score_pallas.1} parent=1 // pred_check_branch
      %18 = sbr.rel (0) target = $region13
    $region12: #{complexity_score_pallas.1} parent=1 // pred_region
      _
    $region13: #{complexity_score_pallas.1} parent=1 // pred_fallthru
      _
    // Predicated region
    $region14: #{complexity_score_pallas.1} parent=1 // pred_check
      _
    $region15: #{complexity_score_pallas.1} parent=1 // pred_check_branch
      %20 = sbr.rel (0) target = $region17
    $region16: #{complexity_score_pallas.1} parent=1 // pred_region
      _
    $region17: #{complexity_score_pallas.1} parent=1 // pred_fallthru
      _
    // Predicated region
    $region18: #{complexity_score_pallas.1} parent=1 // pred_check
      _
    $region19: #{complexity_score_pallas.1} parent=1 // pred_check_branch
      %22 = sbr.rel (0) target = $region21
    $region20: #{complexity_score_pallas.1} parent=1 // pred_region
      _
    $region21: #{complexity_score_pallas.1} parent=1 // pred_fallthru
      _
    %p23 = scmp.eq.s32.totalorder 0, 0
    // Predicated region
    $region22: #{complexity_score_pallas.1} parent=1 // pred_check
      %p24 = pneg %p23
    $region23: #{complexity_score_pallas.1} parent=1 // pred_check_branch
      %26 = sbr.rel (%p24) target = $region25
    $region24: #{complexity_score_pallas.1} parent=1 // pred_region
      %vm27 = vcmask 254976
      %28 = vst.msk [vmem:[#allocation2] sm:$0x3] %vm27, 0.0
    $region25: #{complexity_score_pallas.1} parent=1 // pred_fallthru
      _
    %v29 = vld [vmem:[%s0] sm:$0xff]
    %v30 = vld [vmem:[%s0 + $0x8] sm:$0xff]
    %v31 = vld [vmem:[%s0 + $0x10] sm:$0xff]
    %v32 = vld [vmem:[%s0 + $0x18] sm:$0xff]
    %v33 = vld [vmem:[%s0 + $0x20] sm:$0xff]
    %v34 = vld [vmem:[%s0 + $0x28] sm:$0xff]
    %v35 = vld [vmem:[%s0 + $0x30] sm:$0xff]
    %v36 = vld [vmem:[%s0 + $0x38] sm:$0xff]
    %v37 = vld [vmem:[%s0 + $0x40] sm:$0xff]
    %v38 = vld [vmem:[%s0 + $0x48] sm:$0xff]
    %v39 = vld [vmem:[%s0 + $0x50] sm:$0xff]
    %v40 = vld [vmem:[%s0 + $0x58] sm:$0xff]
    %v41 = vld [vmem:[%s0 + $0x60] sm:$0xff]
    %v42 = vld [vmem:[%s0 + $0x68] sm:$0xff]
    %v43 = vld [vmem:[%s0 + $0x70] sm:$0xff]
    %v44 = vld [vmem:[%s0 + $0x78] sm:$0xff]
    %v45 = vld [vmem:[%s0 + $0x80] sm:$0xff]
    %v46 = vld [vmem:[%s0 + $0x88] sm:$0xff]
    %v47 = vld [vmem:[%s0 + $0x90] sm:$0xff]
    %v48 = vld [vmem:[%s0 + $0x98] sm:$0xff]
    %v49 = vld [vmem:[%s0 + $0xa0] sm:$0xff]
    %v50 = vld [vmem:[%s0 + $0xa8] sm:$0xff]
    %v51 = vld [vmem:[%s0 + $0xb0] sm:$0xff]
    %v52 = vld [vmem:[%s0 + $0xb8] sm:$0xff]
    %v53 = vld [vmem:[%s0 + $0xc0] sm:$0xff]
    %v54 = vld [vmem:[%s0 + $0xc8] sm:$0xff]
    %v55 = vld [vmem:[%s0 + $0xd0] sm:$0xff]
    %v56 = vld [vmem:[%s0 + $0xd8] sm:$0xff]
    %v57 = vld [vmem:[%s0 + $0xe0] sm:$0xff]
    %v58 = vld [vmem:[%s0 + $0xe8] sm:$0xff]
    %v59 = vld [vmem:[%s0 + $0xf0] sm:$0xff]
    %v60 = vld [vmem:[%s0 + $0xf8] sm:$0xff]
    %v61 = vld [vmem:[%s0 + $0x100] sm:$0xff]
    %v62 = vld [vmem:[%s0 + $0x108] sm:$0xff]
    %v63 = vld [vmem:[%s0 + $0x110] sm:$0xff]
    %v64 = vld [vmem:[%s0 + $0x118] sm:$0xff]
    %v65 = vld [vmem:[%s0 + $0x120] sm:$0xff]
    %v66 = vld [vmem:[%s0 + $0x128] sm:$0xff]
    %v67 = vld [vmem:[%s0 + $0x130] sm:$0xff]
    %v68 = vld [vmem:[%s0 + $0x138] sm:$0xff]
    %v69 = vld [vmem:[%s0 + $0x140] sm:$0xff]
    %v70 = vld [vmem:[%s0 + $0x148] sm:$0xff]
    %v71 = vld [vmem:[%s0 + $0x150] sm:$0xff]
    %v72 = vld [vmem:[%s0 + $0x158] sm:$0xff]
    %v73 = vld [vmem:[%s0 + $0x160] sm:$0xff]
    %v74 = vld [vmem:[%s0 + $0x168] sm:$0xff]
    %v75 = vld [vmem:[%s0 + $0x170] sm:$0xff]
    %v76 = vld [vmem:[%s0 + $0x178] sm:$0xff]
    %v77 = vld [vmem:[%s0 + $0x180] sm:$0xff]
    %v78 = vld [vmem:[%s0 + $0x188] sm:$0xff]
    %v79 = vld [vmem:[%s0 + $0x190] sm:$0xff]
    %v80 = vld [vmem:[%s0 + $0x198] sm:$0xff]
    %v81 = vld [vmem:[%s0 + $0x1a0] sm:$0xff]
    %v82 = vld [vmem:[%s0 + $0x1a8] sm:$0xff]
    %v83 = vld [vmem:[%s0 + $0x1b0] sm:$0xff]
    %v84 = vld [vmem:[%s0 + $0x1b8] sm:$0xff]
    %v85 = vld [vmem:[%s0 + $0x1c0] sm:$0xff]
    %v86 = vld [vmem:[%s0 + $0x1c8] sm:$0xff]
    %v87 = vld [vmem:[%s0 + $0x1d0] sm:$0xff]
    %v88 = vld [vmem:[%s0 + $0x1d8] sm:$0xff]
    %v89 = vld [vmem:[%s0 + $0x1e0] sm:$0xff]
    %v90 = vld [vmem:[%s0 + $0x1e8] sm:$0xff]
    %v91 = vld [vmem:[%s0 + $0x1f0] sm:$0xff]
    %v92 = vld [vmem:[%s0 + $0x1f8] sm:$0xff]
    %v93 = vld [vmem:[%s0 + $0x200] sm:$0xff]
    %v94 = vld [vmem:[%s0 + $0x208] sm:$0xff]
    %v95 = vld [vmem:[%s0 + $0x210] sm:$0xff]
    %v96 = vld [vmem:[%s0 + $0x218] sm:$0xff]
    %v97 = vld [vmem:[%s0 + $0x220] sm:$0xff]
    %v98 = vld [vmem:[%s0 + $0x228] sm:$0xff]
    %v99 = vld [vmem:[%s0 + $0x230] sm:$0xff]
    %v100 = vld [vmem:[%s0 + $0x238] sm:$0xff]
    %v101 = vld [vmem:[%s0 + $0x240] sm:$0xff]
    %v102 = vld [vmem:[%s0 + $0x248] sm:$0xff]
    %v103 = vld [vmem:[%s0 + $0x250] sm:$0xff]
    %v104 = vld [vmem:[%s0 + $0x258] sm:$0xff]
    %v105 = vld [vmem:[%s0 + $0x260] sm:$0xff]
    %v106 = vld [vmem:[%s0 + $0x268] sm:$0xff]
    %v107 = vld [vmem:[%s0 + $0x270] sm:$0xff]
    %v108 = vld [vmem:[%s0 + $0x278] sm:$0xff]
    %v109 = vld [vmem:[%s0 + $0x280] sm:$0xff]
    %v110 = vld [vmem:[%s0 + $0x288] sm:$0xff]
    %v111 = vld [vmem:[%s0 + $0x290] sm:$0xff]
    %v112 = vld [vmem:[%s0 + $0x298] sm:$0xff]
    %v113 = vld [vmem:[%s0 + $0x2a0] sm:$0xff]
    %v114 = vld [vmem:[%s0 + $0x2a8] sm:$0xff]
    %v115 = vld [vmem:[%s0 + $0x2b0] sm:$0xff]
    %v116 = vld [vmem:[%s0 + $0x2b8] sm:$0xff]
    %v117 = vld [vmem:[%s0 + $0x2c0] sm:$0xff]
    %v118 = vld [vmem:[%s0 + $0x2c8] sm:$0xff]
    %v119 = vld [vmem:[%s0 + $0x2d0] sm:$0xff]
    %v120 = vld [vmem:[%s0 + $0x2d8] sm:$0xff]
    %v121 = vld [vmem:[%s0 + $0x2e0] sm:$0xff]
    %v122 = vld [vmem:[%s0 + $0x2e8] sm:$0xff]
    %v123 = vld [vmem:[%s0 + $0x2f0] sm:$0xff]
    %v124 = vld [vmem:[%s0 + $0x2f8] sm:$0xff]
    %v125 = vld [vmem:[%s0 + $0x300] sm:$0xff]
    %v126 = vld [vmem:[%s0 + $0x308] sm:$0xff]
    %v127 = vld [vmem:[%s0 + $0x310] sm:$0xff]
    %v128 = vld [vmem:[%s0 + $0x318] sm:$0xff]
    %v129 = vld [vmem:[%s0 + $0x320] sm:$0xff]
    %v130 = vld [vmem:[%s0 + $0x328] sm:$0xff]
    %v131 = vld [vmem:[%s0 + $0x330] sm:$0xff]
    %v132 = vld [vmem:[%s0 + $0x338] sm:$0xff]
    %v133 = vld [vmem:[%s0 + $0x340] sm:$0xff]
    %v134 = vld [vmem:[%s0 + $0x348] sm:$0xff]
    %v135 = vld [vmem:[%s0 + $0x350] sm:$0xff]
    %v136 = vld [vmem:[%s0 + $0x358] sm:$0xff]
    %v137 = vld [vmem:[%s0 + $0x360] sm:$0xff]
    %v138 = vld [vmem:[%s0 + $0x368] sm:$0xff]
    %v139 = vld [vmem:[%s0 + $0x370] sm:$0xff]
    %v140 = vld [vmem:[%s0 + $0x378] sm:$0xff]
    %v141 = vld [vmem:[%s0 + $0x380] sm:$0xff]
    %v142 = vld [vmem:[%s0 + $0x388] sm:$0xff]
    %v143 = vld [vmem:[%s0 + $0x390] sm:$0xff]
    %v144 = vld [vmem:[%s0 + $0x398] sm:$0xff]
    %v145 = vld [vmem:[%s0 + $0x3a0] sm:$0xff]
    %v146 = vld [vmem:[%s0 + $0x3a8] sm:$0xff]
    %v147 = vld [vmem:[%s0 + $0x3b0] sm:$0xff]
    %v148 = vld [vmem:[%s0 + $0x3b8] sm:$0xff]
    %v149 = vld [vmem:[%s0 + $0x3c0] sm:$0xff]
    %v150 = vld [vmem:[%s0 + $0x3c8] sm:$0xff]
    %v151 = vld [vmem:[%s0 + $0x3d0] sm:$0xff]
    %v152 = vld [vmem:[%s0 + $0x3d8] sm:$0xff]
    %v153 = vld [vmem:[%s0 + $0x3e0] sm:$0xff]
    %v154 = vld [vmem:[%s0 + $0x3e8] sm:$0xff]
    %v155 = vld [vmem:[%s0 + $0x3f0] sm:$0xff]
    %v156 = vld [vmem:[%s0 + $0x3f8] sm:$0xff]
    %v157 = vld [vmem:[%s0 + $0x400] sm:$0xff]
    %v158 = vld [vmem:[%s0 + $0x408] sm:$0xff]
    %v159 = vld [vmem:[%s0 + $0x410] sm:$0xff]
    %v160 = vld [vmem:[%s0 + $0x418] sm:$0xff]
    %v161 = vld [vmem:[%s0 + $0x420] sm:$0xff]
    %v162 = vld [vmem:[%s0 + $0x428] sm:$0xff]
    %v163 = vld [vmem:[%s0 + $0x430] sm:$0xff]
    %v164 = vld [vmem:[%s0 + $0x438] sm:$0xff]
    %v165 = vld [vmem:[%s0 + $0x440] sm:$0xff]
    %v166 = vld [vmem:[%s0 + $0x448] sm:$0xff]
    %v167 = vld [vmem:[%s0 + $0x450] sm:$0xff]
    %v168 = vld [vmem:[%s0 + $0x458] sm:$0xff]
    %v169 = vld [vmem:[%s0 + $0x460] sm:$0xff]
    %v170 = vld [vmem:[%s0 + $0x468] sm:$0xff]
    %v171 = vld [vmem:[%s0 + $0x470] sm:$0xff]
    %v172 = vld [vmem:[%s0 + $0x478] sm:$0xff]
    %v173 = vld [vmem:[%s0 + $0x480] sm:$0xff]
    %v174 = vld [vmem:[%s0 + $0x488] sm:$0xff]
    %v175 = vld [vmem:[%s0 + $0x490] sm:$0xff]
    %v176 = vld [vmem:[%s0 + $0x498] sm:$0xff]
    %v177 = vld [vmem:[%s0 + $0x4a0] sm:$0xff]
    %v178 = vld [vmem:[%s0 + $0x4a8] sm:$0xff]
    %v179 = vld [vmem:[%s0 + $0x4b0] sm:$0xff]
    %v180 = vld [vmem:[%s0 + $0x4b8] sm:$0xff]
    %v181 = vld [vmem:[%s0 + $0x4c0] sm:$0xff]
    %v182 = vld [vmem:[%s0 + $0x4c8] sm:$0xff]
    %v183 = vld [vmem:[%s0 + $0x4d0] sm:$0xff]
    %v184 = vld [vmem:[%s0 + $0x4d8] sm:$0xff]
    %v185 = vld [vmem:[%s0 + $0x4e0] sm:$0xff]
    %v186 = vld [vmem:[%s0 + $0x4e8] sm:$0xff]
    %v187 = vld [vmem:[%s0 + $0x4f0] sm:$0xff]
    %v188 = vld [vmem:[%s0 + $0x4f8] sm:$0xff]
    %v189 = vld [vmem:[%s0 + $0x500] sm:$0xff]
    %v190 = vld [vmem:[%s0 + $0x508] sm:$0xff]
    %v191 = vld [vmem:[%s0 + $0x510] sm:$0xff]
    %v192 = vld [vmem:[%s0 + $0x518] sm:$0xff]
    %v193 = vld [vmem:[%s0 + $0x520] sm:$0xff]
    %v194 = vld [vmem:[%s0 + $0x528] sm:$0xff]
    %v195 = vld [vmem:[%s0 + $0x530] sm:$0xff]
    %v196 = vld [vmem:[%s0 + $0x538] sm:$0xff]
    %v197 = vld [vmem:[%s0 + $0x540] sm:$0xff]
    %v198 = vld [vmem:[%s0 + $0x548] sm:$0xff]
    %v199 = vld [vmem:[%s0 + $0x550] sm:$0xff]
    %v200 = vld [vmem:[%s0 + $0x558] sm:$0xff]
    %v201 = vld [vmem:[%s0 + $0x560] sm:$0xff]
    %v202 = vld [vmem:[%s0 + $0x568] sm:$0xff]
    %v203 = vld [vmem:[%s0 + $0x570] sm:$0xff]
    %v204 = vld [vmem:[%s0 + $0x578] sm:$0xff]
    %v205 = vld [vmem:[%s0 + $0x580] sm:$0xff]
    %v206 = vld [vmem:[%s0 + $0x588] sm:$0xff]
    %v207 = vld [vmem:[%s0 + $0x590] sm:$0xff]
    %v208 = vld [vmem:[%s0 + $0x598] sm:$0xff]
    %v209 = vld [vmem:[%s0 + $0x5a0] sm:$0xff]
    %v210 = vld [vmem:[%s0 + $0x5a8] sm:$0xff]
    %v211 = vld [vmem:[%s0 + $0x5b0] sm:$0xff]
    %v212 = vld [vmem:[%s0 + $0x5b8] sm:$0xff]
    %v213 = vld [vmem:[%s0 + $0x5c0] sm:$0xff]
    %v214 = vld [vmem:[%s0 + $0x5c8] sm:$0xff]
    %v215 = vld [vmem:[%s0 + $0x5d0] sm:$0xff]
    %v216 = vld [vmem:[%s0 + $0x5d8] sm:$0xff]
    %v217 = vld [vmem:[%s0 + $0x5e0] sm:$0xff]
    %v218 = vld [vmem:[%s0 + $0x5e8] sm:$0xff]
    %v219 = vld [vmem:[%s0 + $0x5f0] sm:$0xff]
    %v220 = vld [vmem:[%s0 + $0x5f8] sm:$0xff]
    %v221 = vld [vmem:[%s0 + $0x600] sm:$0xff]
    %v222 = vld [vmem:[%s0 + $0x608] sm:$0xff]
    %v223 = vld [vmem:[%s0 + $0x610] sm:$0xff]
    %v224 = vld [vmem:[%s0 + $0x618] sm:$0xff]
    %v225 = vld [vmem:[%s0 + $0x620] sm:$0xff]
    %v226 = vld [vmem:[%s0 + $0x628] sm:$0xff]
    %v227 = vld [vmem:[%s0 + $0x630] sm:$0xff]
    %v228 = vld [vmem:[%s0 + $0x638] sm:$0xff]
    %v229 = vld [vmem:[%s0 + $0x640] sm:$0xff]
    %v230 = vld [vmem:[%s0 + $0x648] sm:$0xff]
    %v231 = vld [vmem:[%s0 + $0x650] sm:$0xff]
    %v232 = vld [vmem:[%s0 + $0x658] sm:$0xff]
    %v233 = vld [vmem:[%s0 + $0x660] sm:$0xff]
    %v234 = vld [vmem:[%s0 + $0x668] sm:$0xff]
    %v235 = vld [vmem:[%s0 + $0x670] sm:$0xff]
    %v236 = vld [vmem:[%s0 + $0x678] sm:$0xff]
    %v237 = vld [vmem:[%s0 + $0x680] sm:$0xff]
    %v238 = vld [vmem:[%s0 + $0x688] sm:$0xff]
    %v239 = vld [vmem:[%s0 + $0x690] sm:$0xff]
    %v240 = vld [vmem:[%s0 + $0x698] sm:$0xff]
    %v241 = vld [vmem:[%s0 + $0x6a0] sm:$0xff]
    %v242 = vld [vmem:[%s0 + $0x6a8] sm:$0xff]
    %v243 = vld [vmem:[%s0 + $0x6b0] sm:$0xff]
    %v244 = vld [vmem:[%s0 + $0x6b8] sm:$0xff]
    %v245 = vld [vmem:[%s0 + $0x6c0] sm:$0xff]
    %v246 = vld [vmem:[%s0 + $0x6c8] sm:$0xff]
    %v247 = vld [vmem:[%s0 + $0x6d0] sm:$0xff]
    %v248 = vld [vmem:[%s0 + $0x6d8] sm:$0xff]
    %v249 = vld [vmem:[%s0 + $0x6e0] sm:$0xff]
    %v250 = vld [vmem:[%s0 + $0x6e8] sm:$0xff]
    %v251 = vld [vmem:[%s0 + $0x6f0] sm:$0xff]
    %v252 = vld [vmem:[%s0 + $0x6f8] sm:$0xff]
    %v253 = vld [vmem:[%s0 + $0x700] sm:$0xff]
    %v254 = vld [vmem:[%s0 + $0x708] sm:$0xff]
    %v255 = vld [vmem:[%s0 + $0x710] sm:$0xff]
    %v256 = vld [vmem:[%s0 + $0x718] sm:$0xff]
    %v257 = vld [vmem:[%s0 + $0x720] sm:$0xff]
    %v258 = vld [vmem:[%s0 + $0x728] sm:$0xff]
    %v259 = vld [vmem:[%s0 + $0x730] sm:$0xff]
    %v260 = vld [vmem:[%s0 + $0x738] sm:$0xff]
    %v261 = vld [vmem:[%s0 + $0x740] sm:$0xff]
    %v262 = vld [vmem:[%s0 + $0x748] sm:$0xff]
    %v263 = vld [vmem:[%s0 + $0x750] sm:$0xff]
    %v264 = vld [vmem:[%s0 + $0x758] sm:$0xff]
    %v265 = vld [vmem:[%s0 + $0x760] sm:$0xff]
    %v266 = vld [vmem:[%s0 + $0x768] sm:$0xff]
    %v267 = vld [vmem:[%s0 + $0x770] sm:$0xff]
    %v268 = vld [vmem:[%s0 + $0x778] sm:$0xff]
    %v269 = vld [vmem:[%s0 + $0x780] sm:$0xff]
    %v270 = vld [vmem:[%s0 + $0x788] sm:$0xff]
    %v271 = vld [vmem:[%s0 + $0x790] sm:$0xff]
    %v272 = vld [vmem:[%s0 + $0x798] sm:$0xff]
    %v273 = vld [vmem:[%s0 + $0x7a0] sm:$0xff]
    %v274 = vld [vmem:[%s0 + $0x7a8] sm:$0xff]
    %v275 = vld [vmem:[%s0 + $0x7b0] sm:$0xff]
    %v276 = vld [vmem:[%s0 + $0x7b8] sm:$0xff]
    %v277 = vld [vmem:[%s0 + $0x7c0] sm:$0xff]
    %v278 = vld [vmem:[%s0 + $0x7c8] sm:$0xff]
    %v279 = vld [vmem:[%s0 + $0x7d0] sm:$0xff]
    %v280 = vld [vmem:[%s0 + $0x7d8] sm:$0xff]
    %v281 = vld [vmem:[%s0 + $0x7e0] sm:$0xff]
    %v282 = vld [vmem:[%s0 + $0x7e8] sm:$0xff]
    %v283 = vld [vmem:[%s0 + $0x7f0] sm:$0xff]
    %v284 = vld [vmem:[%s0 + $0x7f8] sm:$0xff]
    %v285 = vld [vmem:[#allocation2] sm:$0x3]
    %v286 = vadd.f32 %v29, %v30
    %v287 = vadd.f32 %v286, %v31
    %v288 = vadd.f32 %v287, %v32
    %v289 = vadd.f32 %v288, %v33
    %v290 = vadd.f32 %v289, %v34
    %v291 = vadd.f32 %v290, %v35
    %v292 = vadd.f32 %v291, %v36
    %v293 = vadd.f32 %v292, %v37
    %v294 = vadd.f32 %v293, %v38
    %v295 = vadd.f32 %v294, %v39
    %v296 = vadd.f32 %v295, %v40
    %v297 = vadd.f32 %v296, %v41
    %v298 = vadd.f32 %v297, %v42
    %v299 = vadd.f32 %v298, %v43
    %v300 = vadd.f32 %v299, %v44
    %v301 = vadd.f32 %v300, %v45
    %v302 = vadd.f32 %v301, %v46
    %v303 = vadd.f32 %v302, %v47
    %v304 = vadd.f32 %v303, %v48
    %v305 = vadd.f32 %v304, %v49
    %v306 = vadd.f32 %v305, %v50
    %v307 = vadd.f32 %v306, %v51
    %v308 = vadd.f32 %v307, %v52
    %v309 = vadd.f32 %v308, %v53
    %v310 = vadd.f32 %v309, %v54
    %v311 = vadd.f32 %v310, %v55
    %v312 = vadd.f32 %v311, %v56
    %v313 = vadd.f32 %v312, %v57
    %v314 = vadd.f32 %v313, %v58
    %v315 = vadd.f32 %v314, %v59
    %v316 = vadd.f32 %v315, %v60
    %317 = vadd.xlane.f32.xlu0 %v316
    %v318 = vpop.xlane.xlu0 %317
    %v319 = vadd.f32 %v61, %v62
    %v320 = vadd.f32 %v319, %v63
    %v321 = vadd.f32 %v320, %v64
    %v322 = vadd.f32 %v321, %v65
    %v323 = vadd.f32 %v322, %v66
    %v324 = vadd.f32 %v323, %v67
    %v325 = vadd.f32 %v324, %v68
    %v326 = vadd.f32 %v325, %v69
    %v327 = vadd.f32 %v326, %v70
    %v328 = vadd.f32 %v327, %v71
    %v329 = vadd.f32 %v328, %v72
    %v330 = vadd.f32 %v329, %v73
    %v331 = vadd.f32 %v330, %v74
    %v332 = vadd.f32 %v331, %v75
    %v333 = vadd.f32 %v332, %v76
    %v334 = vadd.f32 %v333, %v77
    %v335 = vadd.f32 %v334, %v78
    %v336 = vadd.f32 %v335, %v79
    %v337 = vadd.f32 %v336, %v80
    %v338 = vadd.f32 %v337, %v81
    %v339 = vadd.f32 %v338, %v82
    %v340 = vadd.f32 %v339, %v83
    %v341 = vadd.f32 %v340, %v84
    %v342 = vadd.f32 %v341, %v85
    %v343 = vadd.f32 %v342, %v86
    %v344 = vadd.f32 %v343, %v87
    %v345 = vadd.f32 %v344, %v88
    %v346 = vadd.f32 %v345, %v89
    %v347 = vadd.f32 %v346, %v90
    %v348 = vadd.f32 %v347, %v91
    %v349 = vadd.f32 %v348, %v92
    %350 = vadd.xlane.f32.xlu0 %v349
    %v351 = vpop.xlane.xlu0 %350
    %v352 = vadd.f32 %v93, %v94
    %v353 = vadd.f32 %v352, %v95
    %v354 = vadd.f32 %v353, %v96
    %v355 = vadd.f32 %v354, %v97
    %v356 = vadd.f32 %v355, %v98
    %v357 = vadd.f32 %v356, %v99
    %v358 = vadd.f32 %v357, %v100
    %v359 = vadd.f32 %v358, %v101
    %v360 = vadd.f32 %v359, %v102
    %v361 = vadd.f32 %v360, %v103
    %v362 = vadd.f32 %v361, %v104
    %v363 = vadd.f32 %v362, %v105
    %v364 = vadd.f32 %v363, %v106
    %v365 = vadd.f32 %v364, %v107
    %v366 = vadd.f32 %v365, %v108
    %v367 = vadd.f32 %v366, %v109
    %v368 = vadd.f32 %v367, %v110
    %v369 = vadd.f32 %v368, %v111
    %v370 = vadd.f32 %v369, %v112
    %v371 = vadd.f32 %v370, %v113
    %v372 = vadd.f32 %v371, %v114
    %v373 = vadd.f32 %v372, %v115
    %v374 = vadd.f32 %v373, %v116
    %v375 = vadd.f32 %v374, %v117
    %v376 = vadd.f32 %v375, %v118
    %v377 = vadd.f32 %v376, %v119
    %v378 = vadd.f32 %v377, %v120
    %v379 = vadd.f32 %v378, %v121
    %v380 = vadd.f32 %v379, %v122
    %v381 = vadd.f32 %v380, %v123
    %v382 = vadd.f32 %v381, %v124
    %383 = vadd.xlane.f32.xlu0 %v382
    %v384 = vpop.xlane.xlu0 %383
    %v385 = vadd.f32 %v125, %v126
    %v386 = vadd.f32 %v385, %v127
    %v387 = vadd.f32 %v386, %v128
    %v388 = vadd.f32 %v387, %v129
    %v389 = vadd.f32 %v388, %v130
    %v390 = vadd.f32 %v389, %v131
    %v391 = vadd.f32 %v390, %v132
    %v392 = vadd.f32 %v391, %v133
    %v393 = vadd.f32 %v392, %v134
    %v394 = vadd.f32 %v393, %v135
    %v395 = vadd.f32 %v394, %v136
    %v396 = vadd.f32 %v395, %v137
    %v397 = vadd.f32 %v396, %v138
    %v398 = vadd.f32 %v397, %v139
    %v399 = vadd.f32 %v398, %v140
    %v400 = vadd.f32 %v399, %v141
    %v401 = vadd.f32 %v400, %v142
    %v402 = vadd.f32 %v401, %v143
    %v403 = vadd.f32 %v402, %v144
    %v404 = vadd.f32 %v403, %v145
    %v405 = vadd.f32 %v404, %v146
    %v406 = vadd.f32 %v405, %v147
    %v407 = vadd.f32 %v406, %v148
    %v408 = vadd.f32 %v407, %v149
    %v409 = vadd.f32 %v408, %v150
    %v410 = vadd.f32 %v409, %v151
    %v411 = vadd.f32 %v410, %v152
    %v412 = vadd.f32 %v411, %v153
    %v413 = vadd.f32 %v412, %v154
    %v414 = vadd.f32 %v413, %v155
    %v415 = vadd.f32 %v414, %v156
    %416 = vadd.xlane.f32.xlu0 %v415
    %v417 = vpop.xlane.xlu0 %416
    %v418 = vadd.f32 %v157, %v158
    %v419 = vadd.f32 %v418, %v159
    %v420 = vadd.f32 %v419, %v160
    %v421 = vadd.f32 %v420, %v161
    %v422 = vadd.f32 %v421, %v162
    %v423 = vadd.f32 %v422, %v163
    %v424 = vadd.f32 %v423, %v164
    %v425 = vadd.f32 %v424, %v165
    %v426 = vadd.f32 %v425, %v166
    %v427 = vadd.f32 %v426, %v167
    %v428 = vadd.f32 %v427, %v168
    %v429 = vadd.f32 %v428, %v169
    %v430 = vadd.f32 %v429, %v170
    %v431 = vadd.f32 %v430, %v171
    %v432 = vadd.f32 %v431, %v172
    %v433 = vadd.f32 %v432, %v173
    %v434 = vadd.f32 %v433, %v174
    %v435 = vadd.f32 %v434, %v175
    %v436 = vadd.f32 %v435, %v176
    %v437 = vadd.f32 %v436, %v177
    %v438 = vadd.f32 %v437, %v178
    %v439 = vadd.f32 %v438, %v179
    %v440 = vadd.f32 %v439, %v180
    %v441 = vadd.f32 %v440, %v181
    %v442 = vadd.f32 %v441, %v182
    %v443 = vadd.f32 %v442, %v183
    %v444 = vadd.f32 %v443, %v184
    %v445 = vadd.f32 %v444, %v185
    %v446 = vadd.f32 %v445, %v186
    %v447 = vadd.f32 %v446, %v187
    %v448 = vadd.f32 %v447, %v188
    %449 = vadd.xlane.f32.xlu0 %v448
    %v450 = vpop.xlane.xlu0 %449
    %v451 = vadd.f32 %v189, %v190
    %v452 = vadd.f32 %v451, %v191
    %v453 = vadd.f32 %v452, %v192
    %v454 = vadd.f32 %v453, %v193
    %v455 = vadd.f32 %v454, %v194
    %v456 = vadd.f32 %v455, %v195
    %v457 = vadd.f32 %v456, %v196
    %v458 = vadd.f32 %v457, %v197
    %v459 = vadd.f32 %v458, %v198
    %v460 = vadd.f32 %v459, %v199
    %v461 = vadd.f32 %v460, %v200
    %v462 = vadd.f32 %v461, %v201
    %v463 = vadd.f32 %v462, %v202
    %v464 = vadd.f32 %v463, %v203
    %v465 = vadd.f32 %v464, %v204
    %v466 = vadd.f32 %v465, %v205
    %v467 = vadd.f32 %v466, %v206
    %v468 = vadd.f32 %v467, %v207
    %v469 = vadd.f32 %v468, %v208
    %v470 = vadd.f32 %v469, %v209
    %v471 = vadd.f32 %v470, %v210
    %v472 = vadd.f32 %v471, %v211
    %v473 = vadd.f32 %v472, %v212
    %v474 = vadd.f32 %v473, %v213
    %v475 = vadd.f32 %v474, %v214
    %v476 = vadd.f32 %v475, %v215
    %v477 = vadd.f32 %v476, %v216
    %v478 = vadd.f32 %v477, %v217
    %v479 = vadd.f32 %v478, %v218
    %v480 = vadd.f32 %v479, %v219
    %v481 = vadd.f32 %v480, %v220
    %482 = vadd.xlane.f32.xlu0 %v481
    %v483 = vpop.xlane.xlu0 %482
    %v484 = vadd.f32 %v221, %v222
    %v485 = vadd.f32 %v484, %v223
    %v486 = vadd.f32 %v485, %v224
    %v487 = vadd.f32 %v486, %v225
    %v488 = vadd.f32 %v487, %v226
    %v489 = vadd.f32 %v488, %v227
    %v490 = vadd.f32 %v489, %v228
    %v491 = vadd.f32 %v490, %v229
    %v492 = vadd.f32 %v491, %v230
    %v493 = vadd.f32 %v492, %v231
    %v494 = vadd.f32 %v493, %v232
    %v495 = vadd.f32 %v494, %v233
    %v496 = vadd.f32 %v495, %v234
    %v497 = vadd.f32 %v496, %v235
    %v498 = vadd.f32 %v497, %v236
    %v499 = vadd.f32 %v498, %v237
    %v500 = vadd.f32 %v499, %v238
    %v501 = vadd.f32 %v500, %v239
    %v502 = vadd.f32 %v501, %v240
    %v503 = vadd.f32 %v502, %v241
    %v504 = vadd.f32 %v503, %v242
    %v505 = vadd.f32 %v504, %v243
    %v506 = vadd.f32 %v505, %v244
    %v507 = vadd.f32 %v506, %v245
    %v508 = vadd.f32 %v507, %v246
    %v509 = vadd.f32 %v508, %v247
    %v510 = vadd.f32 %v509, %v248
    %v511 = vadd.f32 %v510, %v249
    %v512 = vadd.f32 %v511, %v250
    %v513 = vadd.f32 %v512, %v251
    %v514 = vadd.f32 %v513, %v252
    %515 = vadd.xlane.f32.xlu0 %v514
    %v516 = vpop.xlane.xlu0 %515
    %v517 = vadd.f32 %v253, %v254
    %v518 = vadd.f32 %v517, %v255
    %v519 = vadd.f32 %v518, %v256
    %v520 = vadd.f32 %v519, %v257
    %v521 = vadd.f32 %v520, %v258
    %v522 = vadd.f32 %v521, %v259
    %v523 = vadd.f32 %v522, %v260
    %v524 = vadd.f32 %v523, %v261
    %v525 = vadd.f32 %v524, %v262
    %v526 = vadd.f32 %v525, %v263
    %v527 = vadd.f32 %v526, %v264
    %v528 = vadd.f32 %v527, %v265
    %v529 = vadd.f32 %v528, %v266
    %v530 = vadd.f32 %v529, %v267
    %v531 = vadd.f32 %v530, %v268
    %v532 = vadd.f32 %v531, %v269
    %v533 = vadd.f32 %v532, %v270
    %v534 = vadd.f32 %v533, %v271
    %v535 = vadd.f32 %v534, %v272
    %v536 = vadd.f32 %v535, %v273
    %v537 = vadd.f32 %v536, %v274
    %v538 = vadd.f32 %v537, %v275
    %v539 = vadd.f32 %v538, %v276
    %v540 = vadd.f32 %v539, %v277
    %v541 = vadd.f32 %v540, %v278
    %v542 = vadd.f32 %v541, %v279
    %v543 = vadd.f32 %v542, %v280
    %v544 = vadd.f32 %v543, %v281
    %v545 = vadd.f32 %v544, %v282
    %v546 = vadd.f32 %v545, %v283
    %v547 = vadd.f32 %v546, %v284
    %548 = vadd.xlane.f32.xlu0 %v547
    %v549 = vpop.xlane.xlu0 %548
    %v558 = vlaneseq
    %v559 = vand.u32 %v558, 127
    %v560 = vperm.slane %v318, %v559
    %v561 = vadd.s32 %v559, 4294967288
    %v562 = vperm.slane %v351, %v561
    %vm563 = vcmask 130112
    %v564 = vsel %vm563, %v562, %v560
    %v565 = vadd.s32 %v559, 4294967280
    %v566 = vperm.slane %v384, %v565
    %vm567 = vcmask 195712
    %v568 = vsel %vm567, %v566, %v564
    %v569 = vadd.s32 %v559, 4294967272
    %v570 = vperm.slane %v417, %v569
    %vm571 = vcmask 261312
    %v572 = vsel %vm571, %v570, %v568
    %v573 = vperm.slane %v450, %v559
    %v574 = vperm.slane %v483, %v561
    %v575 = vsel %vm563, %v574, %v573
    %v576 = vperm.slane %v516, %v565
    %v577 = vsel %vm567, %v576, %v575
    %v578 = vperm.slane %v549, %v569
    %v579 = vsel %vm571, %v578, %v577
    %vm580 = vcmask 1041409
    %v581 = vsel %vm580, %v579, %v572
    %v583 = vadd.f32 %v285, %v581
    %vm584 = vcmask 254976
    %585 = vst.msk [vmem:[#allocation2] sm:$0x3] %vm584, %v583
    // Predicated region
    $region26: #{complexity_score_pallas.1} parent=1 // pred_check
      %p586 = pneg %p23
    $region27: #{complexity_score_pallas.1} parent=1 // pred_check_branch
      %588 = sbr.rel (%p586) target = $region29
    $region28: #{complexity_score_pallas.1} parent=1 // pred_region
      %v589 = vld [vmem:[#allocation2] sm:$0x3]
      %v590 = vmul.f32 %v589, 0.00024414063
      %v591 = vperm.slane %v590, 0
      %v592 = vlaneseq
      %v593 = vshrl.u32 %v592, 7
      %595 = vset.pattern.permute.xlu0 %v593
      %596 = vperm.xlu0 %595, %v591
      %v597 = vpop.permute.xlu0 %596
      %v598 = vlaneseq
      %v599 = vshrl.u32 %v598, 7
      %v600 = vadd.s32 %v599, 8
      %601 = vset.pattern.permute.xlu0 %v600
      %602 = vperm.xlu0 %601, %v591
      %v603 = vpop.permute.xlu0 %602
      %v604 = vlaneseq
      %v605 = vshrl.u32 %v604, 7
      %v606 = vadd.s32 %v605, 16
      %607 = vset.pattern.permute.xlu0 %v606
      %608 = vperm.xlu0 %607, %v591
      %v609 = vpop.permute.xlu0 %608
      %v610 = vlaneseq
      %v611 = vshrl.u32 %v610, 7
      %v612 = vadd.s32 %v611, 24
      %613 = vset.pattern.permute.xlu0 %v612
      %614 = vperm.xlu0 %613, %v591
      %v615 = vpop.permute.xlu0 %614
      %v616 = vperm.slane %v590, 1
      %v617 = vlaneseq
      %v618 = vshrl.u32 %v617, 7
      %620 = vset.pattern.permute.xlu0 %v618
      %621 = vperm.xlu0 %620, %v616
      %v622 = vpop.permute.xlu0 %621
      %v623 = vlaneseq
      %v624 = vshrl.u32 %v623, 7
      %v625 = vadd.s32 %v624, 8
      %626 = vset.pattern.permute.xlu0 %v625
      %627 = vperm.xlu0 %626, %v616
      %v628 = vpop.permute.xlu0 %627
      %v629 = vlaneseq
      %v630 = vshrl.u32 %v629, 7
      %v631 = vadd.s32 %v630, 16
      %632 = vset.pattern.permute.xlu0 %v631
      %633 = vperm.xlu0 %632, %v616
      %v634 = vpop.permute.xlu0 %633
      %v635 = vlaneseq
      %v636 = vshrl.u32 %v635, 7
      %v637 = vadd.s32 %v636, 24
      %638 = vset.pattern.permute.xlu0 %v637
      %639 = vperm.xlu0 %638, %v616
      %v640 = vpop.permute.xlu0 %639
      %v641 = vld [vmem:[%s1] sm:$0xff]
      %v642 = vld [vmem:[%s1 + $0x8] sm:$0xff]
      %v643 = vld [vmem:[%s1 + $0x10] sm:$0xff]
      %v644 = vld [vmem:[%s1 + $0x18] sm:$0xff]
      %v645 = vmul.f32 %v597, %v641
      %v646 = vmul.f32 %v603, %v642
      %v647 = vmul.f32 %v609, %v643
      %v648 = vmul.f32 %v615, %v644
      %v649 = vmul.f32 %v622, %v641
      %v650 = vmul.f32 %v628, %v642
      %v651 = vmul.f32 %v634, %v643
      %v652 = vmul.f32 %v640, %v644
      %vm653 = vcmask 523264
      %v654 = vsel %vm653, %v645, 0.0
      %v655 = vsel %vm653, %v646, 0.0
      %v656 = vadd.f32 %v654, %v655
      %v657 = vsel %vm653, %v647, 0.0
      %v658 = vadd.f32 %v656, %v657
      %v659 = vsel %vm653, %v648, 0.0
      %v660 = vadd.f32 %v658, %v659
      %v661 = vrot.slane %v660, 4
      %v662 = vadd.f32 %v660, %v661
      %v663 = vrot.slane %v662, 2
      %v664 = vadd.f32 %v662, %v663
      %v665 = vrot.slane %v664, 1
      %v666 = vadd.f32 %v664, %v665
      %v667 = vsel %vm653, %v649, 0.0
      %v668 = vsel %vm653, %v650, 0.0
      %v669 = vadd.f32 %v667, %v668
      %v670 = vsel %vm653, %v651, 0.0
      %v671 = vadd.f32 %v669, %v670
      %v672 = vsel %vm653, %v652, 0.0
      %v673 = vadd.f32 %v671, %v672
      %v674 = vrot.slane %v673, 4
      %v675 = vadd.f32 %v673, %v674
      %v676 = vrot.slane %v675, 2
      %v677 = vadd.f32 %v675, %v676
      %v678 = vrot.slane %v677, 1
      %v679 = vadd.f32 %v677, %v678
      %v680 = vld [vmem:[%s2] sm:$0x1]
      %v682 = vperm.slane %v680, 0
      %v684 = vadd.f32 %v666, %v682
      %v685 = vadd.f32 %v679, %v682
      %v686 = vmax.f32 %v684, 0.0
      %v687 = vmax.f32 %v685, 0.0
      %v688 = vld [vmem:[%s3] sm:$0x1]
      %v690 = vperm.slane %v688, 0
      %v692 = vmul.f32 %v686, %v690
      %v693 = vmul.f32 %v687, %v690
      %v696 = vrot.slane %v693, 7
      %v697 = vsel %vm580, %v696, %v692
      %vm699 = vcmask 517120
      %v700 = vsel %vm699, %v697, 0.0
      %701 = vadd.xlane.f32.xlu0 %v700
      %v702 = vpop.xlane.xlu0 %701
      %v703 = vld [vmem:[#allocation3] sm:$0x1]
      %v705 = vperm.slane %v703, 0
      %v707 = vadd.f32 %v702, %v705
      %v708 = vxor.u32 %v707, 2147483648
      %v709 = vmul.f32 %v708, 1.442695
      %v710 = vpow.pop %v709
      %v711 = vadd.f32 %v710, 1.0
      %v712 = vrcp.pop %v711
      %v713 = vmul.f32 %v711, %v712
      %v714 = vsub.f32 1.0, %v713
      %v715 = vmul.f32 %v712, %v714
      %v716 = vadd.f32 %v712, %v715
      %vm717 = vweird.f32 %v711
      %vm718 = vweird.f32 %v712
      %vm719 = vmor %vm717, %vm718
      %v720 = vsel %vm719, %v712, %v716
      %v721 = vand.u32 2147483647, %v711
      %vm722 = vcmp.eq.f32.partialorder %v721, 8.507059e+37
      %v723 = vand.u32 %v711, 2147483648
      %v724 = vor.u32 1.1754944e-38, %v723
      %v725 = vsel %vm722, %v724, %v720
      %v726 = vmul.f32 1.0, %v725
      %vm727 = vcmask 1024
      %v728 = vsel %vm727, %v726, 0.0
      %729 = vadd.xlane.f32.xlu0 %v728
      %v730 = vpop.xlane.xlu0 %729
      %v731 = vrot.slane %v730, 4
      %v732 = vadd.f32 %v730, %v731
      %v733 = vrot.slane %v732, 2
      %v734 = vadd.f32 %v732, %v733
      %v735 = vrot.slane %v734, 1
      %v736 = vadd.f32 %v734, %v735
      %s737 = vtos %v736
      %v738 = vrcp.pop 2.0
      %v739 = vmul.f32 2.0, %v738
      %v740 = vsub.f32 1.0, %v739
      %v741 = vmul.f32 %v738, %v740
      %v742 = vadd.f32 %v738, %v741
      %vm743 = vweird.f32 %v738
      %v744 = vsel %vm743, %v738, %v742
      %s745 = vtos %v744
      %s746 = smul.f32 %s737, %s745
      %v747 = vstv %s746
      %vm748 = vcmask 0
      %749 = vst.msk [vmem:[#allocation4] sm:$0x1] %vm748, %v747
    $region29: #{complexity_score_pallas.1} parent=1 // pred_fallthru
      _
    // Predicated region
    $region30: #{complexity_score_pallas.1} parent=1 // pred_check
      _
    $region31: #{complexity_score_pallas.1} parent=1 // pred_check_branch
      %751 = sbr.rel (0) target = $region33
    $region32: #{complexity_score_pallas.1} parent=1 // pred_region
      %753 = vsyncadd [#allocation5], 0
      %s755 = sshll.u32 [#allocation4], 4
      %s756 = int_to_ptr.vmem [resolvable:$true] %s755
      %s757 = sshll.u32 %s5, 4
      %s758 = int_to_ptr.hbm [resolvable:$true] %s757
      %760 = dma.vmem_to_hbm [thread:$0]  %s756, 16, %s758, [#allocation5]
    $region33: #{complexity_score_pallas.1} parent=1 // pred_fallthru
      _
    // Predicated region
    $region34: #{complexity_score_pallas.1} parent=1 // pred_check
      _
    $region35: #{complexity_score_pallas.1} parent=1 // pred_check_branch
      %762 = sbr.rel (0) target = $region37
    $region36: #{complexity_score_pallas.1} parent=1 // pred_region
      %764 = dma.done [#allocation5], 16
    $region37: #{complexity_score_pallas.1} parent=1 // pred_fallthru
      _
    %765 = vsyncpa [#allocation5], 1

</llo_original>
